<compile_context>
chip_gen: v6e
topology: v6e:2x2x1
jax: 0.10.0
libtpu: 0.0.40
codegen_flags: <defaults>
</compile_context>

<pallas_src>
import functools

import jax
import jax.numpy as jnp
from jax.experimental import pallas as pl
from jax.experimental.pallas import tpu as pltpu


def _round_up(x, m):
    return ((x + m - 1) // m) * m


def _emb_hull_kernel(h_ref, fea2_ref, out_ref, *, hull_cos: bool):
    """One lane-tile of edges, feature-major.

    h_ref:    (F,     TE)   angular features, feature-major
    fea2_ref: (2,     TE)   [r[row]; r[col]]
    out_ref:  (F + 2, TE)   [h' ; r[row] ; r[col]]
    """
    num_feat = h_ref.shape[0]
    h = h_ref[...]                                           # (F, TE)
    if hull_cos and num_feat > 1:
        # Row 0 untouched; cos on the rest.  cos rides the EUP slot; compute
        # in f32 even if the output store narrows to bf16.
        out_ref[0:1, :] = h[0:1, :].astype(out_ref.dtype)
        out_ref[1:num_feat, :] = jnp.cos(
            h[1:num_feat, :].astype(jnp.float32)).astype(out_ref.dtype)
    else:
        out_ref[0:num_feat, :] = h.astype(out_ref.dtype)
    out_ref[num_feat:num_feat + 2, :] = fea2_ref[...].astype(out_ref.dtype)


def _emb_hull_ref(r, h, edge_index, hull_cos=True):
    """Pure-JAX reference mirroring the PyTorch forward (also tiny-graph path)."""
    row, col = edge_index[0], edge_index[1]
    fea2 = jnp.stack([r[row].astype(h.dtype), r[col].astype(h.dtype)], axis=1)
    if hull_cos:
        h = jnp.concatenate([h[:, :1], jnp.cos(h[:, 1:])], axis=1)
    return jnp.concatenate([h, fea2], axis=1)


def emb_hull(r, h, edge_index, *, hull_cos: bool = True, tile_e: int = 16384,
             feature_major_out: bool = False, out_dtype=None, use_kernel=None):
    """JAX/Pallas equivalent of embHull.forward(r, h, edge_index).

    Returns [E, F+2] (PyTorch layout) by default; with feature_major_out=True
    returns the kernel's native [F+2, E] slab with no extra transpose pass.
    NOTE: like jnp (unlike torch), out-of-range edge indices are clamped, not
    raised.
    """
    row, col = edge_index[0], edge_index[1]
    E, F = h.shape
    r = r.astype(h.dtype)
    out_dtype = h.dtype if out_dtype is None else out_dtype

    # Tiny graphs: kernel launch overhead exceeds total data movement.
    if use_kernel is None:
        use_kernel = (E * F) >= 4096
    if not use_kernel:
        out = _emb_hull_ref(r, h, edge_index, hull_cos=hull_cos).astype(out_dtype)
        return out.T if feature_major_out else out

    # Wrapper glue (single XLA passes each): gather node radii onto edge
    # endpoints as one feature-major [2, E] slab, and put h feature-major so
    # the kernel's loads/stores are lane-dense.
    fea2 = jnp.stack([r[row], r[col]], axis=0)               # (2, E)
    h_t = h.T                                                # (F, E)

    # --- Tile sizing -------------------------------------------------------
    in_item = jnp.dtype(h.dtype).itemsize
    out_item = jnp.dtype(out_dtype).itemsize
    bytes_per_lane = (F + 2) * in_item + (F + 2) * out_item  # h_t + fea2 + out
    vmem_budget = 16 * 1024 * 1024                           # v7x-safe
    cap_vmem = max(128, (vmem_budget // (2 * bytes_per_lane)) // 128 * 128)
    # Keep >= 4 grid steps for large E so v7x's two TensorCores both get work,
    # but never shrink below 1024 lanes (step overhead on v5e/v6e).
    cap_split = max(1024, _round_up(-(-E // 4), 128))
    tile_e = min(max(128, tile_e), cap_vmem, cap_split)
    tile_e = max(128, _round_up(tile_e, 128))

    kernel = functools.partial(_emb_hull_kernel, hull_cos=hull_cos)

    out_t = pl.pallas_call(
        kernel,
        out_shape=jax.ShapeDtypeStruct((F + 2, E), out_dtype),
        grid=(pl.cdiv(E, tile_e),),                          # ragged E: last
        in_specs=[                                           # block is masked
            pl.BlockSpec((F, tile_e), lambda i: (0, i)),     # by Pallas, no pad
            pl.BlockSpec((2, tile_e), lambda i: (0, i)),
        ],
        out_specs=pl.BlockSpec((F + 2, tile_e), lambda i: (0, i)),
        compiler_params=pltpu.CompilerParams(
            dimension_semantics=("parallel",)                # megacore splits
        ),                                                   # edge tiles
    )(h_t, fea2)

    if feature_major_out:
        return out_t                                         # (F + 2, E)
    return out_t.T                                           # (E, F + 2)


if __name__ == "__main__":
    key = jax.random.PRNGKey(0)
    k_r, k_h, k_row, k_col = jax.random.split(key, 4)

    N = 32     # nodes
    E = 1024   # edges
    F = 8      # edge angular features (col 0 untouched, cols 1: get cos)

    r = jax.random.normal(k_r, (N,), dtype=jnp.float32)
    h = jax.random.normal(k_h, (E, F), dtype=jnp.float32)
    edge_index = jnp.stack(
        [
            jax.random.randint(k_row, (E,), 0, N, dtype=jnp.int32),
            jax.random.randint(k_col, (E,), 0, N, dtype=jnp.int32),
        ],
        axis=0,
    )  # [2, E]

    # Default PyTorch-layout path.
    out = jax.block_until_ready(
        emb_hull(r, h, edge_index, hull_cos=True, use_kernel=True))
    ref = _emb_hull_ref(r, h, edge_index, hull_cos=True)
    assert out.shape == (E, F + 2)
    assert jnp.allclose(out, ref, atol=1e-6, rtol=1e-6)

    # Feature-major fast path: no output transpose at all.
    out_fm = jax.block_until_ready(
        emb_hull(r, h, edge_index, hull_cos=True, use_kernel=True,
                 feature_major_out=True))
    assert out_fm.shape == (F + 2, E)
    assert jnp.allclose(out_fm, ref.T, atol=1e-6, rtol=1e-6)

    # Ragged edge count (exercises the masked partial last block — no jnp.pad)
    # and the hull_cos=False path.
    E2 = 1000
    h2 = jax.random.normal(k_h, (E2, F), dtype=jnp.float32)
    ei2 = edge_index[:, :E2]
    out2 = jax.block_until_ready(
        emb_hull(r, h2, ei2, hull_cos=False, use_kernel=True, tile_e=512))
    ref2 = _emb_hull_ref(r, h2, ei2, hull_cos=False)
    assert out2.shape == (E2, F + 2)
    assert jnp.allclose(out2, ref2, atol=1e-6, rtol=1e-6)

    print("KERNEL_OK")
</pallas_src>

<mosaic_0001>
module attributes {stable_mosaic.version = 11 : i64} {
  func.func @_emb_hull_kernel(%arg0: i32, %arg1: memref<8x1024xf32, #tpu.memory_space<vmem>>, %arg2: memref<2x1024xf32, #tpu.memory_space<vmem>>, %arg3: memref<10x1024xf32, #tpu.memory_space<vmem>>) attributes {dimension_semantics = [#tpu.dimension_semantics<parallel>], iteration_bounds = array<i64: 1>, scalar_prefetch = 0 : i64, scratch_operands = 0 : i64, tpu.core_type = #tpu.core_type<tc>, window_params = [{transform_indices = @transform_0, window_bounds = array<i64: 8, 1024>}, {transform_indices = @transform_1, window_bounds = array<i64: 2, 1024>}, {transform_indices = @transform_2, window_bounds = array<i64: 10, 1024>}]} {
    %c0 = arith.constant 0 : index
    %c0_0 = arith.constant 0 : index
    %0 = vector.load %arg1[%c0, %c0_0] : memref<8x1024xf32, #tpu.memory_space<vmem>>, vector<8x1024xf32>
    %1 = vector.extract_strided_slice %0 {offsets = [0, 0], sizes = [1, 1024], strides = [1, 1]} : vector<8x1024xf32> to vector<1x1024xf32>
    %c0_1 = arith.constant 0 : index
    %c0_2 = arith.constant 0 : index
    %2 = vector.load %arg3[%c0_1, %c0_2] : memref<10x1024xf32, #tpu.memory_space<vmem>>, vector<1x1024xf32>
    tpu.vector_store %arg3[%c0_1, %c0_2], %1 {strides = array<i32>} : memref<10x1024xf32, #tpu.memory_space<vmem>>, vector<1x1024xf32>,
    %3 = vector.extract_strided_slice %0 {offsets = [1, 0], sizes = [7, 1024], strides = [1, 1]} : vector<8x1024xf32> to vector<7x1024xf32>
    %4 = math.cos %3 : vector<7x1024xf32>
    %c1 = arith.constant 1 : index
    %c0_3 = arith.constant 0 : index
    %5 = vector.load %arg3[%c1, %c0_3] : memref<10x1024xf32, #tpu.memory_space<vmem>>, vector<7x1024xf32>
    tpu.vector_store %arg3[%c1, %c0_3], %4 {strides = array<i32>} : memref<10x1024xf32, #tpu.memory_space<vmem>>, vector<7x1024xf32>,
    %c0_4 = arith.constant 0 : index
    %c0_5 = arith.constant 0 : index
    %6 = vector.load %arg2[%c0_4, %c0_5] : memref<2x1024xf32, #tpu.memory_space<vmem>>, vector<2x1024xf32>
    %c8 = arith.constant 8 : index
    %c0_6 = arith.constant 0 : index
    %7 = vector.load %arg3[%c8, %c0_6] : memref<10x1024xf32, #tpu.memory_space<vmem>>, vector<2x1024xf32>
    tpu.vector_store %arg3[%c8, %c0_6], %6 {strides = array<i32>} : memref<10x1024xf32, #tpu.memory_space<vmem>>, vector<2x1024xf32>,
    return
  }
  func.func @transform_0(%arg0: i32) -> (i32, i32) {
    %c0_i32 = arith.constant 0 : i32
    %c0_i32_0 = arith.constant 0 : i32
    return %c0_i32, %arg0 : i32, i32
  }
  func.func @transform_1(%arg0: i32) -> (i32, i32) {
    %c0_i32 = arith.constant 0 : i32
    %c0_i32_0 = arith.constant 0 : i32
    return %c0_i32, %arg0 : i32, i32
  }
  func.func @transform_2(%arg0: i32) -> (i32, i32) {
    %c0_i32 = arith.constant 0 : i32
    %c0_i32_0 = arith.constant 0 : i32
    return %c0_i32, %arg0 : i32, i32
  }
}

</mosaic_0001>

<llo_original>
// kernel: tpu_custom_call.1
$region0: #{tpu_custom_call.1}
  #allocation0 [shape = 'u32[]', space=smem, size = 0x4, offset = 0x4, fixed_abs, tag = 'smem constant byte address 0x4 - core index']
  #allocation1 [shape = 'u32[144,128]{1,0:T(1,128)}', space=vmem, size = 0x12000, scoped, tag = 'internal scratch']
  %s0 = inlined_call_operand.hbm [shape: f32[8,1024], index: 0, kind: input, shape index: {}]
  %s1 = inlined_call_operand.hbm [shape: f32[2,1024], index: 1, kind: input, shape index: {}]
  %s2 = inlined_call_operand.hbm [shape: f32[10,1024], index: 2, kind: output, shape index: {}]
  %s3 = sld [smem:[#allocation0]]
  $region26: #{tpu_custom_call.1} parent=0
    _
  %s5 = ssub.s32 1, %s3
  %s6 = scalar_select 0, %s5, %s3
  $region1: #{tpu_custom_call.1} parent=0
    #allocation2 [shape = 'u8[32768]{0}', space=vmem, size = 0x8000, scoped, tag = 'input window, operand 0, single buffered']
    #allocation3 [shape = 's32[1]{0}', space=sflag, size = 0x4, scoped, tag = 'scoped memory for tpu_custom_call.1']
    #allocation4 [shape = 's32[1]{0}', space=sflag, size = 0x4, scoped, tag = 'scoped memory for tpu_custom_call.1']
    #allocation5 [shape = 'u8[8192]{0}', space=vmem, size = 0x2000, scoped, tag = 'input window, operand 1, single buffered']
    #allocation6 [shape = 's32[1]{0}', space=sflag, size = 0x4, scoped, tag = 'scoped memory for tpu_custom_call.1']
    #allocation7 [shape = 'u8[65536]{0}', space=vmem, size = 0x10000, scoped, tag = 'output window, operand 0, single buffered']
    %7 = vsyncpa [#allocation3], 0
    %8 = vsyncpa [#allocation6], 0
    %9 = vsyncpa [#allocation4], 0
    // Predicated region
    $region2: #{tpu_custom_call.1} parent=1 // pred_check
      _
    $region3: #{tpu_custom_call.1} parent=1 // pred_check_branch
      %11 = sbr.rel (0) target = $region5
    $region4: #{tpu_custom_call.1} parent=1 // pred_region
      %s13 = ssub.s32 1024, 1024
      %14 = vsyncadd [#allocation3], %s13
      %s16 = sshll.u32 [#allocation2], 4
      %s17 = int_to_ptr.vmem [resolvable:$true] %s16
      %19 = dma.hbm_to_vmem [thread:$0]  %s0, 1024, %s17, [#allocation3]
    $region5: #{tpu_custom_call.1} parent=1 // pred_fallthru
      _
    // Predicated region
    $region6: #{tpu_custom_call.1} parent=1 // pred_check
      _
    $region7: #{tpu_custom_call.1} parent=1 // pred_check_branch
      %21 = sbr.rel (0) target = $region9
    $region8: #{tpu_custom_call.1} parent=1 // pred_region
      %s23 = ssub.s32 256, 256
      %24 = vsyncadd [#allocation6], %s23
      %s26 = sshll.u32 [#allocation5], 4
      %s27 = int_to_ptr.vmem [resolvable:$true] %s26
      %29 = dma.hbm_to_vmem [thread:$0]  %s1, 256, %s27, [#allocation6]
    $region9: #{tpu_custom_call.1} parent=1 // pred_fallthru
      _
    // Predicated region
    $region10: #{tpu_custom_call.1} parent=1 // pred_check
      _
    $region11: #{tpu_custom_call.1} parent=1 // pred_check_branch
      %31 = sbr.rel (0) target = $region13
    $region12: #{tpu_custom_call.1} parent=1 // pred_region
      %32 = dma.done [#allocation3], 1024
    $region13: #{tpu_custom_call.1} parent=1 // pred_fallthru
      _
    // Predicated region
    $region14: #{tpu_custom_call.1} parent=1 // pred_check
      _
    $region15: #{tpu_custom_call.1} parent=1 // pred_check_branch
      %34 = sbr.rel (0) target = $region17
    $region16: #{tpu_custom_call.1} parent=1 // pred_region
      %35 = dma.done [#allocation6], 256
    $region17: #{tpu_custom_call.1} parent=1 // pred_fallthru
      _
    %v36 = vld [vmem:[#allocation2] sm:$0xff]
    %v37 = vld [vmem:[#allocation2 + $0x8] sm:$0xff]
    %v38 = vld [vmem:[#allocation2 + $0x10] sm:$0xff]
    %v39 = vld [vmem:[#allocation2 + $0x18] sm:$0xff]
    %v40 = vld [vmem:[#allocation2 + $0x20] sm:$0xff]
    %v41 = vld [vmem:[#allocation2 + $0x28] sm:$0xff]
    %v42 = vld [vmem:[#allocation2 + $0x30] sm:$0xff]
    %v43 = vld [vmem:[#allocation2 + $0x38] sm:$0xff]
    %v52 = vcombine.low %v36, %v37
    %v53 = vcombine.low %v38, %v39
    %v54 = vcombine.low %v40, %v41
    %v55 = vcombine.low %v42, %v43
    %v57 = vunpack.c.l.s4 1966171168
    %v58 = vunpack.c.0.s8 %v57
    %v59 = vlaneseq
    %v60 = vshrl.u32 %v59, 7
    %v61 = vsub.s32 %v58, %v60
    %v62 = vrot.slane %v52, %v61
    %v64 = vunpack.c.l.s4 1966171168
    %v65 = vunpack.c.0.s8 %v64
    %v66 = vlaneseq
    %v67 = vshrl.u32 %v66, 7
    %v68 = vsub.s32 %v65, %v67
    %v69 = vrot.slane %v53, %v68
    %v71 = vunpack.c.l.s4 1966171168
    %v72 = vunpack.c.0.s8 %v71
    %v73 = vlaneseq
    %v74 = vshrl.u32 %v73, 7
    %v75 = vsub.s32 %v72, %v74
    %v76 = vrot.slane %v54, %v75
    %v78 = vunpack.c.l.s4 1966171168
    %v79 = vunpack.c.0.s8 %v78
    %v80 = vlaneseq
    %v81 = vshrl.u32 %v80, 7
    %v82 = vsub.s32 %v79, %v81
    %v83 = vrot.slane %v55, %v82
    %v84 = vcombine.low %v62, %v69
    %v85 = vcombine.low %v76, %v83
    %v87 = vunpack.c.l.s4 1966171168
    %v88 = vunpack.c.0.s8 %v87
    %v89 = vlaneseq
    %v90 = vshrl.u32 %v89, 7
    %v91 = vsub.s32 %v88, %v90
    %v92 = vrot.slane %v84, %v91
    %v94 = vunpack.c.l.s4 1966171168
    %v95 = vunpack.c.0.s8 %v94
    %v96 = vlaneseq
    %v97 = vshrl.u32 %v96, 7
    %v98 = vsub.s32 %v95, %v97
    %v99 = vrot.slane %v85, %v98
    %v100 = vcombine.low %v92, %v99
    %102 = vst [vmem:[#allocation7] ss:$8 sm:$0xf] %v100
    %103 = vst [vmem:[#allocation7] ss:$8 sm:$0xf0] %v100
    %v104 = vand.u32 2147483647, %v36
    %vm105 = vcmp.le.f32.partialorder %v104, 0.7853982
    %vm106 = vcmp.lt.s32.totalorder %v36, 0
    %v107 = vand.u32 %v36, 2139095040
    %v108 = vshrl.u32 %v107, 23
    %v109 = vsub.s32 %v108, 127
    %v110 = vand.u32 2147483647, %v36
    %v111 = vand.u32 %v110, 8388607
    %v112 = vor.u32 %v111, 8388608
    %v113 = vsub.s32 0, %v112
    %v114 = vadd.s32 %v109, 1
    %vm115 = vcmp.gt.s32.totalorder %v114, 0
    %v116 = vsel %vm115, %v114, 0
    %v117 = vshrl.u32 %v116, 5
    %v118 = vand.u32 %v116, 31
    %v119 = vsub.s32 32, %v118
    %v120 = vshrl.u32 683565275, %v119
    %v121 = vshll.u32 683565275, %v118
    %v122 = vshrl.u32 2475754826, %v119
    %v123 = vor.u32 %v121, %v122
    %v124 = vshll.u32 2475754826, %v118
    %v125 = vshrl.u32 2131351028, %v119
    %v126 = vor.u32 %v124, %v125
    %v127 = vshll.u32 2131351028, %v118
    %v128 = vshrl.u32 2102212464, %v119
    %v129 = vor.u32 %v127, %v128
    %v130 = vshll.u32 2102212464, %v118
    %v131 = vshrl.u32 920167782, %v119
    %v132 = vor.u32 %v130, %v131
    %v133 = vshll.u32 920167782, %v118
    %v134 = vshrl.u32 1326507024, %v119
    %v135 = vor.u32 %v133, %v134
    %vm136 = vcmp.lt.s32.totalorder %v117, 1
    %vm137 = vcmp.lt.s32.totalorder %v117, 2
    %vm138 = vcmp.lt.s32.totalorder %v117, 3
    %vm139 = vcmp.lt.s32.totalorder %v117, 4
    %v140 = vsel %vm136, %v120, %v123
    %v141 = vsel %vm139, %v129, 2102212464
    %v142 = vsel %vm138, %v126, %v141
    %v143 = vsel %vm137, %v140, %v142
    %v144 = vsel %vm136, %v123, %v126
    %v145 = vsel %vm139, %v132, 920167782
    %v146 = vsel %vm138, %v129, %v145
    %v147 = vsel %vm137, %v144, %v146
    %v148 = vsel %vm136, %v126, %v129
    %v149 = vsel %vm139, %v135, 1326507024
    %v150 = vsel %vm138, %v132, %v149
    %v151 = vsel %vm137, %v148, %v150
    %v152 = vshll.u32 %v112, 8
    %v153 = vmul.u32.u64.compose %v152, %v151
    %v154 = vextract.low.u32 %v153
    %v155 = vextract.high.u32 %v153
    %v156 = vmul.u32.u64.compose %v152, %v147
    %v157 = vextract.low.u32 %v156
    %v158 = vextract.high.u32 %v156
    %v159 = vmul.u32 %v152, %v143
    %v160 = vadd.s32 %v155, %v157
    %vm161 = vc.u32 %v155, %v157
    %v162 = vadd.s32 %v158, 1
    %v163 = vsel %vm161, %v162, %v158
    %v164 = vadd.s32 %v159, %v163
    %v165 = vadd.s32 %v164, 536870912
    %v166 = vshrl.u32 %v165, 30
    %v167 = vshll.u32 %v166, 30
    %v168 = vsub.s32 %v164, %v167
    %vm169 = vcmp.lt.s32.totalorder %v168, 0
    %v170 = vsub.s32 0, %v168
    %v171 = vsel %vm169, %v170, %v168
    %v172 = vclz %v171
    %v173 = vsub.s32 %v172, 2
    %vm174 = vcmp.gt.s32.totalorder 0, %v173
    %v175 = vsel %vm174, 0, %v173
    %v176 = vsub.s32 32, %v175
    %v177 = vshll.u32 %v168, %v175
    %v178 = vshrl.u32 %v160, %v176
    %v179 = vor.u32 %v177, %v178
    %v180 = vsub.s32 4294967266, %v175
    %v181 = vadd.s32 %v180, 127
    %v182 = vshll.u32 %v181, 23
    %v183 = vor.u32 4788187, %v182
    %v184 = vand.u32 2147483647, %v183
    %v186 = vcvt.s32.f32 %v179
    %v187 = vmul.f32 %v186, %v184
    %v188 = vxor.u32 %v187, 2147483648
    %v189 = vsel %vm106, %v188, %v187
    %v190 = vsub.s32 4, %v166
    %v191 = vsel %vm106, %v190, %v166
    %v192 = vsel %vm105, %v36, %v189
    %v193 = vsel %vm105, 0, %v191
    %v194 = vcosq.f32.pop %v192
    %v195 = vsinq.f32.pop %v192
    %vm196 = vweird.f32 %v36
    %v197 = vand.u32 %v193, 3
    %vm198 = vcmp.lt.s32.totalorder %v197, 2
    %vm199 = vcmp.eq.s32.totalorder %v197, 0
    %v200 = vxor.u32 %v195, 2147483648
    %v201 = vsel %vm199, %v194, %v200
    %vm202 = vcmp.eq.s32.totalorder %v197, 2
    %v203 = vxor.u32 %v194, 2147483648
    %v204 = vsel %vm202, %v203, %v195
    %v205 = vsel %vm198, %v201, %v204
    %v206 = vsel %vm196, nan, %v205
    %v207 = vand.u32 2147483647, %v37
    %vm208 = vcmp.le.f32.partialorder %v207, 0.7853982
    %vm209 = vcmp.lt.s32.totalorder %v37, 0
    %v210 = vand.u32 %v37, 2139095040
    %v211 = vshrl.u32 %v210, 23
    %v212 = vsub.s32 %v211, 127
    %v213 = vand.u32 2147483647, %v37
    %v214 = vand.u32 %v213, 8388607
    %v215 = vor.u32 %v214, 8388608
    %v216 = vsub.s32 0, %v215
    %v217 = vadd.s32 %v212, 1
    %vm218 = vcmp.gt.s32.totalorder %v217, 0
    %v219 = vsel %vm218, %v217, 0
    %v220 = vshrl.u32 %v219, 5
    %v221 = vand.u32 %v219, 31
    %v222 = vsub.s32 32, %v221
    %v223 = vshrl.u32 683565275, %v222
    %v224 = vshll.u32 683565275, %v221
    %v225 = vshrl.u32 2475754826, %v222
    %v226 = vor.u32 %v224, %v225
    %v227 = vshll.u32 2475754826, %v221
    %v228 = vshrl.u32 2131351028, %v222
    %v229 = vor.u32 %v227, %v228
    %v230 = vshll.u32 2131351028, %v221
    %v231 = vshrl.u32 2102212464, %v222
    %v232 = vor.u32 %v230, %v231
    %v233 = vshll.u32 2102212464, %v221
    %v234 = vshrl.u32 920167782, %v222
    %v235 = vor.u32 %v233, %v234
    %v236 = vshll.u32 920167782, %v221
    %v237 = vshrl.u32 1326507024, %v222
    %v238 = vor.u32 %v236, %v237
    %vm239 = vcmp.lt.s32.totalorder %v220, 1
    %vm240 = vcmp.lt.s32.totalorder %v220, 2
    %vm241 = vcmp.lt.s32.totalorder %v220, 3
    %vm242 = vcmp.lt.s32.totalorder %v220, 4
    %v243 = vsel %vm239, %v223, %v226
    %v244 = vsel %vm242, %v232, 2102212464
    %v245 = vsel %vm241, %v229, %v244
    %v246 = vsel %vm240, %v243, %v245
    %v247 = vsel %vm239, %v226, %v229
    %v248 = vsel %vm242, %v235, 920167782
    %v249 = vsel %vm241, %v232, %v248
    %v250 = vsel %vm240, %v247, %v249
    %v251 = vsel %vm239, %v229, %v232
    %v252 = vsel %vm242, %v238, 1326507024
    %v253 = vsel %vm241, %v235, %v252
    %v254 = vsel %vm240, %v251, %v253
    %v255 = vshll.u32 %v215, 8
    %v256 = vmul.u32.u64.compose %v255, %v254
    %v257 = vextract.low.u32 %v256
    %v258 = vextract.high.u32 %v256
    %v259 = vmul.u32.u64.compose %v255, %v250
    %v260 = vextract.low.u32 %v259
    %v261 = vextract.high.u32 %v259
    %v262 = vmul.u32 %v255, %v246
    %v263 = vadd.s32 %v258, %v260
    %vm264 = vc.u32 %v258, %v260
    %v265 = vadd.s32 %v261, 1
    %v266 = vsel %vm264, %v265, %v261
    %v267 = vadd.s32 %v262, %v266
    %v268 = vadd.s32 %v267, 536870912
    %v269 = vshrl.u32 %v268, 30
    %v270 = vshll.u32 %v269, 30
    %v271 = vsub.s32 %v267, %v270
    %vm272 = vcmp.lt.s32.totalorder %v271, 0
    %v273 = vsub.s32 0, %v271
    %v274 = vsel %vm272, %v273, %v271
    %v275 = vclz %v274
    %v276 = vsub.s32 %v275, 2
    %vm277 = vcmp.gt.s32.totalorder 0, %v276
    %v278 = vsel %vm277, 0, %v276
    %v279 = vsub.s32 32, %v278
    %v280 = vshll.u32 %v271, %v278
    %v281 = vshrl.u32 %v263, %v279
    %v282 = vor.u32 %v280, %v281
    %v283 = vsub.s32 4294967266, %v278
    %v284 = vadd.s32 %v283, 127
    %v285 = vshll.u32 %v284, 23
    %v286 = vor.u32 4788187, %v285
    %v287 = vand.u32 2147483647, %v286
    %v289 = vcvt.s32.f32 %v282
    %v290 = vmul.f32 %v289, %v287
    %v291 = vxor.u32 %v290, 2147483648
    %v292 = vsel %vm209, %v291, %v290
    %v293 = vsub.s32 4, %v269
    %v294 = vsel %vm209, %v293, %v269
    %v295 = vsel %vm208, %v37, %v292
    %v296 = vsel %vm208, 0, %v294
    %v297 = vcosq.f32.pop %v295
    %v298 = vsinq.f32.pop %v295
    %vm299 = vweird.f32 %v37
    %v300 = vand.u32 %v296, 3
    %vm301 = vcmp.lt.s32.totalorder %v300, 2
    %vm302 = vcmp.eq.s32.totalorder %v300, 0
    %v303 = vxor.u32 %v298, 2147483648
    %v304 = vsel %vm302, %v297, %v303
    %vm305 = vcmp.eq.s32.totalorder %v300, 2
    %v306 = vxor.u32 %v297, 2147483648
    %v307 = vsel %vm305, %v306, %v298
    %v308 = vsel %vm301, %v304, %v307
    %v309 = vsel %vm299, nan, %v308
    %v310 = vand.u32 2147483647, %v38
    %vm311 = vcmp.le.f32.partialorder %v310, 0.7853982
    %vm312 = vcmp.lt.s32.totalorder %v38, 0
    %v313 = vand.u32 %v38, 2139095040
    %v314 = vshrl.u32 %v313, 23
    %v315 = vsub.s32 %v314, 127
    %v316 = vand.u32 2147483647, %v38
    %v317 = vand.u32 %v316, 8388607
    %v318 = vor.u32 %v317, 8388608
    %v319 = vsub.s32 0, %v318
    %v320 = vadd.s32 %v315, 1
    %vm321 = vcmp.gt.s32.totalorder %v320, 0
    %v322 = vsel %vm321, %v320, 0
    %v323 = vshrl.u32 %v322, 5
    %v324 = vand.u32 %v322, 31
    %v325 = vsub.s32 32, %v324
    %v326 = vshrl.u32 683565275, %v325
    %v327 = vshll.u32 683565275, %v324
    %v328 = vshrl.u32 2475754826, %v325
    %v329 = vor.u32 %v327, %v328
    %v330 = vshll.u32 2475754826, %v324
    %v331 = vshrl.u32 2131351028, %v325
    %v332 = vor.u32 %v330, %v331
    %v333 = vshll.u32 2131351028, %v324
    %v334 = vshrl.u32 2102212464, %v325
    %v335 = vor.u32 %v333, %v334
    %v336 = vshll.u32 2102212464, %v324
    %v337 = vshrl.u32 920167782, %v325
    %v338 = vor.u32 %v336, %v337
    %v339 = vshll.u32 920167782, %v324
    %v340 = vshrl.u32 1326507024, %v325
    %v341 = vor.u32 %v339, %v340
    %vm342 = vcmp.lt.s32.totalorder %v323, 1
    %vm343 = vcmp.lt.s32.totalorder %v323, 2
    %vm344 = vcmp.lt.s32.totalorder %v323, 3
    %vm345 = vcmp.lt.s32.totalorder %v323, 4
    %v346 = vsel %vm342, %v326, %v329
    %v347 = vsel %vm345, %v335, 2102212464
    %v348 = vsel %vm344, %v332, %v347
    %v349 = vsel %vm343, %v346, %v348
    %v350 = vsel %vm342, %v329, %v332
    %v351 = vsel %vm345, %v338, 920167782
    %v352 = vsel %vm344, %v335, %v351
    %v353 = vsel %vm343, %v350, %v352
    %v354 = vsel %vm342, %v332, %v335
    %v355 = vsel %vm345, %v341, 1326507024
    %v356 = vsel %vm344, %v338, %v355
    %v357 = vsel %vm343, %v354, %v356
    %v358 = vshll.u32 %v318, 8
    %v359 = vmul.u32.u64.compose %v358, %v357
    %v360 = vextract.low.u32 %v359
    %v361 = vextract.high.u32 %v359
    %v362 = vmul.u32.u64.compose %v358, %v353
    %v363 = vextract.low.u32 %v362
    %v364 = vextract.high.u32 %v362
    %v365 = vmul.u32 %v358, %v349
    %v366 = vadd.s32 %v361, %v363
    %vm367 = vc.u32 %v361, %v363
    %v368 = vadd.s32 %v364, 1
    %v369 = vsel %vm367, %v368, %v364
    %v370 = vadd.s32 %v365, %v369
    %v371 = vadd.s32 %v370, 536870912
    %v372 = vshrl.u32 %v371, 30
    %v373 = vshll.u32 %v372, 30
    %v374 = vsub.s32 %v370, %v373
    %vm375 = vcmp.lt.s32.totalorder %v374, 0
    %v376 = vsub.s32 0, %v374
    %v377 = vsel %vm375, %v376, %v374
    %v378 = vclz %v377
    %v379 = vsub.s32 %v378, 2
    %vm380 = vcmp.gt.s32.totalorder 0, %v379
    %v381 = vsel %vm380, 0, %v379
    %v382 = vsub.s32 32, %v381
    %v383 = vshll.u32 %v374, %v381
    %v384 = vshrl.u32 %v366, %v382
    %v385 = vor.u32 %v383, %v384
    %v386 = vsub.s32 4294967266, %v381
    %v387 = vadd.s32 %v386, 127
    %v388 = vshll.u32 %v387, 23
    %v389 = vor.u32 4788187, %v388
    %v390 = vand.u32 2147483647, %v389
    %v392 = vcvt.s32.f32 %v385
    %v393 = vmul.f32 %v392, %v390
    %v394 = vxor.u32 %v393, 2147483648
    %v395 = vsel %vm312, %v394, %v393
    %v396 = vsub.s32 4, %v372
    %v397 = vsel %vm312, %v396, %v372
    %v398 = vsel %vm311, %v38, %v395
    %v399 = vsel %vm311, 0, %v397
    %v400 = vcosq.f32.pop %v398
    %v401 = vsinq.f32.pop %v398
    %vm402 = vweird.f32 %v38
    %v403 = vand.u32 %v399, 3
    %vm404 = vcmp.lt.s32.totalorder %v403, 2
    %vm405 = vcmp.eq.s32.totalorder %v403, 0
    %v406 = vxor.u32 %v401, 2147483648
    %v407 = vsel %vm405, %v400, %v406
    %vm408 = vcmp.eq.s32.totalorder %v403, 2
    %v409 = vxor.u32 %v400, 2147483648
    %v410 = vsel %vm408, %v409, %v401
    %v411 = vsel %vm404, %v407, %v410
    %v412 = vsel %vm402, nan, %v411
    %v413 = vand.u32 2147483647, %v39
    %vm414 = vcmp.le.f32.partialorder %v413, 0.7853982
    %vm415 = vcmp.lt.s32.totalorder %v39, 0
    %v416 = vand.u32 %v39, 2139095040
    %v417 = vshrl.u32 %v416, 23
    %v418 = vsub.s32 %v417, 127
    %v419 = vand.u32 2147483647, %v39
    %v420 = vand.u32 %v419, 8388607
    %v421 = vor.u32 %v420, 8388608
    %v422 = vsub.s32 0, %v421
    %v423 = vadd.s32 %v418, 1
    %vm424 = vcmp.gt.s32.totalorder %v423, 0
    %v425 = vsel %vm424, %v423, 0
    %v426 = vshrl.u32 %v425, 5
    %v427 = vand.u32 %v425, 31
    %v428 = vsub.s32 32, %v427
    %v429 = vshrl.u32 683565275, %v428
    %v430 = vshll.u32 683565275, %v427
    %v431 = vshrl.u32 2475754826, %v428
    %v432 = vor.u32 %v430, %v431
    %v433 = vshll.u32 2475754826, %v427
    %v434 = vshrl.u32 2131351028, %v428
    %v435 = vor.u32 %v433, %v434
    %v436 = vshll.u32 2131351028, %v427
    %v437 = vshrl.u32 2102212464, %v428
    %v438 = vor.u32 %v436, %v437
    %v439 = vshll.u32 2102212464, %v427
    %v440 = vshrl.u32 920167782, %v428
    %v441 = vor.u32 %v439, %v440
    %v442 = vshll.u32 920167782, %v427
    %v443 = vshrl.u32 1326507024, %v428
    %v444 = vor.u32 %v442, %v443
    %vm445 = vcmp.lt.s32.totalorder %v426, 1
    %vm446 = vcmp.lt.s32.totalorder %v426, 2
    %vm447 = vcmp.lt.s32.totalorder %v426, 3
    %vm448 = vcmp.lt.s32.totalorder %v426, 4
    %v449 = vsel %vm445, %v429, %v432
    %v450 = vsel %vm448, %v438, 2102212464
    %v451 = vsel %vm447, %v435, %v450
    %v452 = vsel %vm446, %v449, %v451
    %v453 = vsel %vm445, %v432, %v435
    %v454 = vsel %vm448, %v441, 920167782
    %v455 = vsel %vm447, %v438, %v454
    %v456 = vsel %vm446, %v453, %v455
    %v457 = vsel %vm445, %v435, %v438
    %v458 = vsel %vm448, %v444, 1326507024
    %v459 = vsel %vm447, %v441, %v458
    %v460 = vsel %vm446, %v457, %v459
    %v461 = vshll.u32 %v421, 8
    %v462 = vmul.u32.u64.compose %v461, %v460
    %v463 = vextract.low.u32 %v462
    %v464 = vextract.high.u32 %v462
    %v465 = vmul.u32.u64.compose %v461, %v456
    %v466 = vextract.low.u32 %v465
    %v467 = vextract.high.u32 %v465
    %v468 = vmul.u32 %v461, %v452
    %v469 = vadd.s32 %v464, %v466
    %vm470 = vc.u32 %v464, %v466
    %v471 = vadd.s32 %v467, 1
    %v472 = vsel %vm470, %v471, %v467
    %v473 = vadd.s32 %v468, %v472
    %v474 = vadd.s32 %v473, 536870912
    %v475 = vshrl.u32 %v474, 30
    %v476 = vshll.u32 %v475, 30
    %v477 = vsub.s32 %v473, %v476
    %vm478 = vcmp.lt.s32.totalorder %v477, 0
    %v479 = vsub.s32 0, %v477
    %v480 = vsel %vm478, %v479, %v477
    %v481 = vclz %v480
    %v482 = vsub.s32 %v481, 2
    %vm483 = vcmp.gt.s32.totalorder 0, %v482
    %v484 = vsel %vm483, 0, %v482
    %v485 = vsub.s32 32, %v484
    %v486 = vshll.u32 %v477, %v484
    %v487 = vshrl.u32 %v469, %v485
    %v488 = vor.u32 %v486, %v487
    %v489 = vsub.s32 4294967266, %v484
    %v490 = vadd.s32 %v489, 127
    %v491 = vshll.u32 %v490, 23
    %v492 = vor.u32 4788187, %v491
    %v493 = vand.u32 2147483647, %v492
    %v495 = vcvt.s32.f32 %v488
    %v496 = vmul.f32 %v495, %v493
    %v497 = vxor.u32 %v496, 2147483648
    %v498 = vsel %vm415, %v497, %v496
    %v499 = vsub.s32 4, %v475
    %v500 = vsel %vm415, %v499, %v475
    %v501 = vsel %vm414, %v39, %v498
    %v502 = vsel %vm414, 0, %v500
    %v503 = vcosq.f32.pop %v501
    %v504 = vsinq.f32.pop %v501
    %vm505 = vweird.f32 %v39
    %v506 = vand.u32 %v502, 3
    %vm507 = vcmp.lt.s32.totalorder %v506, 2
    %vm508 = vcmp.eq.s32.totalorder %v506, 0
    %v509 = vxor.u32 %v504, 2147483648
    %v510 = vsel %vm508, %v503, %v509
    %vm511 = vcmp.eq.s32.totalorder %v506, 2
    %v512 = vxor.u32 %v503, 2147483648
    %v513 = vsel %vm511, %v512, %v504
    %v514 = vsel %vm507, %v510, %v513
    %v515 = vsel %vm505, nan, %v514
    %v516 = vand.u32 2147483647, %v40
    %vm517 = vcmp.le.f32.partialorder %v516, 0.7853982
    %vm518 = vcmp.lt.s32.totalorder %v40, 0
    %v519 = vand.u32 %v40, 2139095040
    %v520 = vshrl.u32 %v519, 23
    %v521 = vsub.s32 %v520, 127
    %v522 = vand.u32 2147483647, %v40
    %v523 = vand.u32 %v522, 8388607
    %v524 = vor.u32 %v523, 8388608
    %v525 = vsub.s32 0, %v524
    %v526 = vadd.s32 %v521, 1
    %vm527 = vcmp.gt.s32.totalorder %v526, 0
    %v528 = vsel %vm527, %v526, 0
    %v529 = vshrl.u32 %v528, 5
    %v530 = vand.u32 %v528, 31
    %v531 = vsub.s32 32, %v530
    %v532 = vshrl.u32 683565275, %v531
    %v533 = vshll.u32 683565275, %v530
    %v534 = vshrl.u32 2475754826, %v531
    %v535 = vor.u32 %v533, %v534
    %v536 = vshll.u32 2475754826, %v530
    %v537 = vshrl.u32 2131351028, %v531
    %v538 = vor.u32 %v536, %v537
    %v539 = vshll.u32 2131351028, %v530
    %v540 = vshrl.u32 2102212464, %v531
    %v541 = vor.u32 %v539, %v540
    %v542 = vshll.u32 2102212464, %v530
    %v543 = vshrl.u32 920167782, %v531
    %v544 = vor.u32 %v542, %v543
    %v545 = vshll.u32 920167782, %v530
    %v546 = vshrl.u32 1326507024, %v531
    %v547 = vor.u32 %v545, %v546
    %vm548 = vcmp.lt.s32.totalorder %v529, 1
    %vm549 = vcmp.lt.s32.totalorder %v529, 2
    %vm550 = vcmp.lt.s32.totalorder %v529, 3
    %vm551 = vcmp.lt.s32.totalorder %v529, 4
    %v552 = vsel %vm548, %v532, %v535
    %v553 = vsel %vm551, %v541, 2102212464
    %v554 = vsel %vm550, %v538, %v553
    %v555 = vsel %vm549, %v552, %v554
    %v556 = vsel %vm548, %v535, %v538
    %v557 = vsel %vm551, %v544, 920167782
    %v558 = vsel %vm550, %v541, %v557
    %v559 = vsel %vm549, %v556, %v558
    %v560 = vsel %vm548, %v538, %v541
    %v561 = vsel %vm551, %v547, 1326507024
    %v562 = vsel %vm550, %v544, %v561
    %v563 = vsel %vm549, %v560, %v562
    %v564 = vshll.u32 %v524, 8
    %v565 = vmul.u32.u64.compose %v564, %v563
    %v566 = vextract.low.u32 %v565
    %v567 = vextract.high.u32 %v565
    %v568 = vmul.u32.u64.compose %v564, %v559
    %v569 = vextract.low.u32 %v568
    %v570 = vextract.high.u32 %v568
    %v571 = vmul.u32 %v564, %v555
    %v572 = vadd.s32 %v567, %v569
    %vm573 = vc.u32 %v567, %v569
    %v574 = vadd.s32 %v570, 1
    %v575 = vsel %vm573, %v574, %v570
    %v576 = vadd.s32 %v571, %v575
    %v577 = vadd.s32 %v576, 536870912
    %v578 = vshrl.u32 %v577, 30
    %v579 = vshll.u32 %v578, 30
    %v580 = vsub.s32 %v576, %v579
    %vm581 = vcmp.lt.s32.totalorder %v580, 0
    %v582 = vsub.s32 0, %v580
    %v583 = vsel %vm581, %v582, %v580
    %v584 = vclz %v583
    %v585 = vsub.s32 %v584, 2
    %vm586 = vcmp.gt.s32.totalorder 0, %v585
    %v587 = vsel %vm586, 0, %v585
    %v588 = vsub.s32 32, %v587
    %v589 = vshll.u32 %v580, %v587
    %v590 = vshrl.u32 %v572, %v588
    %v591 = vor.u32 %v589, %v590
    %v592 = vsub.s32 4294967266, %v587
    %v593 = vadd.s32 %v592, 127
    %v594 = vshll.u32 %v593, 23
    %v595 = vor.u32 4788187, %v594
    %v596 = vand.u32 2147483647, %v595
    %v598 = vcvt.s32.f32 %v591
    %v599 = vmul.f32 %v598, %v596
    %v600 = vxor.u32 %v599, 2147483648
    %v601 = vsel %vm518, %v600, %v599
    %v602 = vsub.s32 4, %v578
    %v603 = vsel %vm518, %v602, %v578
    %v604 = vsel %vm517, %v40, %v601
    %v605 = vsel %vm517, 0, %v603
    %v606 = vcosq.f32.pop %v604
    %v607 = vsinq.f32.pop %v604
    %vm608 = vweird.f32 %v40
    %v609 = vand.u32 %v605, 3
    %vm610 = vcmp.lt.s32.totalorder %v609, 2
    %vm611 = vcmp.eq.s32.totalorder %v609, 0
    %v612 = vxor.u32 %v607, 2147483648
    %v613 = vsel %vm611, %v606, %v612
    %vm614 = vcmp.eq.s32.totalorder %v609, 2
    %v615 = vxor.u32 %v606, 2147483648
    %v616 = vsel %vm614, %v615, %v607
    %v617 = vsel %vm610, %v613, %v616
    %v618 = vsel %vm608, nan, %v617
    %v619 = vand.u32 2147483647, %v41
    %vm620 = vcmp.le.f32.partialorder %v619, 0.7853982
    %vm621 = vcmp.lt.s32.totalorder %v41, 0
    %v622 = vand.u32 %v41, 2139095040
    %v623 = vshrl.u32 %v622, 23
    %v624 = vsub.s32 %v623, 127
    %v625 = vand.u32 2147483647, %v41
    %v626 = vand.u32 %v625, 8388607
    %v627 = vor.u32 %v626, 8388608
    %v628 = vsub.s32 0, %v627
    %v629 = vadd.s32 %v624, 1
    %vm630 = vcmp.gt.s32.totalorder %v629, 0
    %v631 = vsel %vm630, %v629, 0
    %v632 = vshrl.u32 %v631, 5
    %v633 = vand.u32 %v631, 31
    %v634 = vsub.s32 32, %v633
    %v635 = vshrl.u32 683565275, %v634
    %v636 = vshll.u32 683565275, %v633
    %v637 = vshrl.u32 2475754826, %v634
    %v638 = vor.u32 %v636, %v637
    %v639 = vshll.u32 2475754826, %v633
    %v640 = vshrl.u32 2131351028, %v634
    %v641 = vor.u32 %v639, %v640
    %v642 = vshll.u32 2131351028, %v633
    %v643 = vshrl.u32 2102212464, %v634
    %v644 = vor.u32 %v642, %v643
    %v645 = vshll.u32 2102212464, %v633
    %v646 = vshrl.u32 920167782, %v634
    %v647 = vor.u32 %v645, %v646
    %v648 = vshll.u32 920167782, %v633
    %v649 = vshrl.u32 1326507024, %v634
    %v650 = vor.u32 %v648, %v649
    %vm651 = vcmp.lt.s32.totalorder %v632, 1
    %vm652 = vcmp.lt.s32.totalorder %v632, 2
    %vm653 = vcmp.lt.s32.totalorder %v632, 3
    %vm654 = vcmp.lt.s32.totalorder %v632, 4
    %v655 = vsel %vm651, %v635, %v638
    %v656 = vsel %vm654, %v644, 2102212464
    %v657 = vsel %vm653, %v641, %v656
    %v658 = vsel %vm652, %v655, %v657
    %v659 = vsel %vm651, %v638, %v641
    %v660 = vsel %vm654, %v647, 920167782
    %v661 = vsel %vm653, %v644, %v660
    %v662 = vsel %vm652, %v659, %v661
    %v663 = vsel %vm651, %v641, %v644
    %v664 = vsel %vm654, %v650, 1326507024
    %v665 = vsel %vm653, %v647, %v664
    %v666 = vsel %vm652, %v663, %v665
    %v667 = vshll.u32 %v627, 8
    %v668 = vmul.u32.u64.compose %v667, %v666
    %v669 = vextract.low.u32 %v668
    %v670 = vextract.high.u32 %v668
    %v671 = vmul.u32.u64.compose %v667, %v662
    %v672 = vextract.low.u32 %v671
    %v673 = vextract.high.u32 %v671
    %v674 = vmul.u32 %v667, %v658
    %v675 = vadd.s32 %v670, %v672
    %vm676 = vc.u32 %v670, %v672
    %v677 = vadd.s32 %v673, 1
    %v678 = vsel %vm676, %v677, %v673
    %v679 = vadd.s32 %v674, %v678
    %v680 = vadd.s32 %v679, 536870912
    %v681 = vshrl.u32 %v680, 30
    %v682 = vshll.u32 %v681, 30
    %v683 = vsub.s32 %v679, %v682
    %vm684 = vcmp.lt.s32.totalorder %v683, 0
    %v685 = vsub.s32 0, %v683
    %v686 = vsel %vm684, %v685, %v683
    %v687 = vclz %v686
    %v688 = vsub.s32 %v687, 2
    %vm689 = vcmp.gt.s32.totalorder 0, %v688
    %v690 = vsel %vm689, 0, %v688
    %v691 = vsub.s32 32, %v690
    %v692 = vshll.u32 %v683, %v690
    %v693 = vshrl.u32 %v675, %v691
    %v694 = vor.u32 %v692, %v693
    %v695 = vsub.s32 4294967266, %v690
    %v696 = vadd.s32 %v695, 127
    %v697 = vshll.u32 %v696, 23
    %v698 = vor.u32 4788187, %v697
    %v699 = vand.u32 2147483647, %v698
    %v701 = vcvt.s32.f32 %v694
    %v702 = vmul.f32 %v701, %v699
    %v703 = vxor.u32 %v702, 2147483648
    %v704 = vsel %vm621, %v703, %v702
    %v705 = vsub.s32 4, %v681
    %v706 = vsel %vm621, %v705, %v681
    %v707 = vsel %vm620, %v41, %v704
    %v708 = vsel %vm620, 0, %v706
    %v709 = vcosq.f32.pop %v707
    %v710 = vsinq.f32.pop %v707
    %vm711 = vweird.f32 %v41
    %v712 = vand.u32 %v708, 3
    %vm713 = vcmp.lt.s32.totalorder %v712, 2
    %vm714 = vcmp.eq.s32.totalorder %v712, 0
    %v715 = vxor.u32 %v710, 2147483648
    %v716 = vsel %vm714, %v709, %v715
    %vm717 = vcmp.eq.s32.totalorder %v712, 2
    %v718 = vxor.u32 %v709, 2147483648
    %v719 = vsel %vm717, %v718, %v710
    %v720 = vsel %vm713, %v716, %v719
    %v721 = vsel %vm711, nan, %v720
    %v722 = vand.u32 2147483647, %v42
    %vm723 = vcmp.le.f32.partialorder %v722, 0.7853982
    %vm724 = vcmp.lt.s32.totalorder %v42, 0
    %v725 = vand.u32 %v42, 2139095040
    %v726 = vshrl.u32 %v725, 23
    %v727 = vsub.s32 %v726, 127
    %v728 = vand.u32 2147483647, %v42
    %v729 = vand.u32 %v728, 8388607
    %v730 = vor.u32 %v729, 8388608
    %v731 = vsub.s32 0, %v730
    %v732 = vadd.s32 %v727, 1
    %vm733 = vcmp.gt.s32.totalorder %v732, 0
    %v734 = vsel %vm733, %v732, 0
    %v735 = vshrl.u32 %v734, 5
    %v736 = vand.u32 %v734, 31
    %v737 = vsub.s32 32, %v736
    %v738 = vshrl.u32 683565275, %v737
    %v739 = vshll.u32 683565275, %v736
    %v740 = vshrl.u32 2475754826, %v737
    %v741 = vor.u32 %v739, %v740
    %v742 = vshll.u32 2475754826, %v736
    %v743 = vshrl.u32 2131351028, %v737
    %v744 = vor.u32 %v742, %v743
    %v745 = vshll.u32 2131351028, %v736
    %v746 = vshrl.u32 2102212464, %v737
    %v747 = vor.u32 %v745, %v746
    %v748 = vshll.u32 2102212464, %v736
    %v749 = vshrl.u32 920167782, %v737
    %v750 = vor.u32 %v748, %v749
    %v751 = vshll.u32 920167782, %v736
    %v752 = vshrl.u32 1326507024, %v737
    %v753 = vor.u32 %v751, %v752
    %vm754 = vcmp.lt.s32.totalorder %v735, 1
    %vm755 = vcmp.lt.s32.totalorder %v735, 2
    %vm756 = vcmp.lt.s32.totalorder %v735, 3
    %vm757 = vcmp.lt.s32.totalorder %v735, 4
    %v758 = vsel %vm754, %v738, %v741
    %v759 = vsel %vm757, %v747, 2102212464
    %v760 = vsel %vm756, %v744, %v759
    %v761 = vsel %vm755, %v758, %v760
    %v762 = vsel %vm754, %v741, %v744
    %v763 = vsel %vm757, %v750, 920167782
    %v764 = vsel %vm756, %v747, %v763
    %v765 = vsel %vm755, %v762, %v764
    %v766 = vsel %vm754, %v744, %v747
    %v767 = vsel %vm757, %v753, 1326507024
    %v768 = vsel %vm756, %v750, %v767
    %v769 = vsel %vm755, %v766, %v768
    %v770 = vshll.u32 %v730, 8
    %v771 = vmul.u32.u64.compose %v770, %v769
    %v772 = vextract.low.u32 %v771
    %v773 = vextract.high.u32 %v771
    %v774 = vmul.u32.u64.compose %v770, %v765
    %v775 = vextract.low.u32 %v774
    %v776 = vextract.high.u32 %v774
    %v777 = vmul.u32 %v770, %v761
    %v778 = vadd.s32 %v773, %v775
    %vm779 = vc.u32 %v773, %v775
    %v780 = vadd.s32 %v776, 1
    %v781 = vsel %vm779, %v780, %v776
    %v782 = vadd.s32 %v777, %v781
    %v783 = vadd.s32 %v782, 536870912
    %v784 = vshrl.u32 %v783, 30
    %v785 = vshll.u32 %v784, 30
    %v786 = vsub.s32 %v782, %v785
    %vm787 = vcmp.lt.s32.totalorder %v786, 0
    %v788 = vsub.s32 0, %v786
    %v789 = vsel %vm787, %v788, %v786
    %v790 = vclz %v789
    %v791 = vsub.s32 %v790, 2
    %vm792 = vcmp.gt.s32.totalorder 0, %v791
    %v793 = vsel %vm792, 0, %v791
    %v794 = vsub.s32 32, %v793
    %v795 = vshll.u32 %v786, %v793
    %v796 = vshrl.u32 %v778, %v794
    %v797 = vor.u32 %v795, %v796
    %v798 = vsub.s32 4294967266, %v793
    %v799 = vadd.s32 %v798, 127
    %v800 = vshll.u32 %v799, 23
    %v801 = vor.u32 4788187, %v800
    %v802 = vand.u32 2147483647, %v801
    %v804 = vcvt.s32.f32 %v797
    %v805 = vmul.f32 %v804, %v802
    %v806 = vxor.u32 %v805, 2147483648
    %v807 = vsel %vm724, %v806, %v805
    %v808 = vsub.s32 4, %v784
    %v809 = vsel %vm724, %v808, %v784
    %v810 = vsel %vm723, %v42, %v807
    %v811 = vsel %vm723, 0, %v809
    %v812 = vcosq.f32.pop %v810
    %v813 = vsinq.f32.pop %v810
    %vm814 = vweird.f32 %v42
    %v815 = vand.u32 %v811, 3
    %vm816 = vcmp.lt.s32.totalorder %v815, 2
    %vm817 = vcmp.eq.s32.totalorder %v815, 0
    %v818 = vxor.u32 %v813, 2147483648
    %v819 = vsel %vm817, %v812, %v818
    %vm820 = vcmp.eq.s32.totalorder %v815, 2
    %v821 = vxor.u32 %v812, 2147483648
    %v822 = vsel %vm820, %v821, %v813
    %v823 = vsel %vm816, %v819, %v822
    %v824 = vsel %vm814, nan, %v823
    %v825 = vand.u32 2147483647, %v43
    %vm826 = vcmp.le.f32.partialorder %v825, 0.7853982
    %vm827 = vcmp.lt.s32.totalorder %v43, 0
    %v828 = vand.u32 %v43, 2139095040
    %v829 = vshrl.u32 %v828, 23
    %v830 = vsub.s32 %v829, 127
    %v831 = vand.u32 2147483647, %v43
    %v832 = vand.u32 %v831, 8388607
    %v833 = vor.u32 %v832, 8388608
    %v834 = vsub.s32 0, %v833
    %v835 = vadd.s32 %v830, 1
    %vm836 = vcmp.gt.s32.totalorder %v835, 0
    %v837 = vsel %vm836, %v835, 0
    %v838 = vshrl.u32 %v837, 5
    %v839 = vand.u32 %v837, 31
    %v840 = vsub.s32 32, %v839
    %v841 = vshrl.u32 683565275, %v840
    %v842 = vshll.u32 683565275, %v839
    %v843 = vshrl.u32 2475754826, %v840
    %v844 = vor.u32 %v842, %v843
    %v845 = vshll.u32 2475754826, %v839
    %v846 = vshrl.u32 2131351028, %v840
    %v847 = vor.u32 %v845, %v846
    %v848 = vshll.u32 2131351028, %v839
    %v849 = vshrl.u32 2102212464, %v840
    %v850 = vor.u32 %v848, %v849
    %v851 = vshll.u32 2102212464, %v839
    %v852 = vshrl.u32 920167782, %v840
    %v853 = vor.u32 %v851, %v852
    %v854 = vshll.u32 920167782, %v839
    %v855 = vshrl.u32 1326507024, %v840
    %v856 = vor.u32 %v854, %v855
    %vm857 = vcmp.lt.s32.totalorder %v838, 1
    %vm858 = vcmp.lt.s32.totalorder %v838, 2
    %vm859 = vcmp.lt.s32.totalorder %v838, 3
    %vm860 = vcmp.lt.s32.totalorder %v838, 4
    %v861 = vsel %vm857, %v841, %v844
    %v862 = vsel %vm860, %v850, 2102212464
    %v863 = vsel %vm859, %v847, %v862
    %v864 = vsel %vm858, %v861, %v863
    %v865 = vsel %vm857, %v844, %v847
    %v866 = vsel %vm860, %v853, 920167782
    %v867 = vsel %vm859, %v850, %v866
    %v868 = vsel %vm858, %v865, %v867
    %v869 = vsel %vm857, %v847, %v850
    %v870 = vsel %vm860, %v856, 1326507024
    %v871 = vsel %vm859, %v853, %v870
    %v872 = vsel %vm858, %v869, %v871
    %v873 = vshll.u32 %v833, 8
    %v874 = vmul.u32.u64.compose %v873, %v872
    %v875 = vextract.low.u32 %v874
    %v876 = vextract.high.u32 %v874
    %v877 = vmul.u32.u64.compose %v873, %v868
    %v878 = vextract.low.u32 %v877
    %v879 = vextract.high.u32 %v877
    %v880 = vmul.u32 %v873, %v864
    %v881 = vadd.s32 %v876, %v878
    %vm882 = vc.u32 %v876, %v878
    %v883 = vadd.s32 %v879, 1
    %v884 = vsel %vm882, %v883, %v879
    %v885 = vadd.s32 %v880, %v884
    %v886 = vadd.s32 %v885, 536870912
    %v887 = vshrl.u32 %v886, 30
    %v888 = vshll.u32 %v887, 30
    %v889 = vsub.s32 %v885, %v888
    %vm890 = vcmp.lt.s32.totalorder %v889, 0
    %v891 = vsub.s32 0, %v889
    %v892 = vsel %vm890, %v891, %v889
    %v893 = vclz %v892
    %v894 = vsub.s32 %v893, 2
    %vm895 = vcmp.gt.s32.totalorder 0, %v894
    %v896 = vsel %vm895, 0, %v894
    %v897 = vsub.s32 32, %v896
    %v898 = vshll.u32 %v889, %v896
    %v899 = vshrl.u32 %v881, %v897
    %v900 = vor.u32 %v898, %v899
    %v901 = vsub.s32 4294967266, %v896
    %v902 = vadd.s32 %v901, 127
    %v903 = vshll.u32 %v902, 23
    %v904 = vor.u32 4788187, %v903
    %v905 = vand.u32 2147483647, %v904
    %v907 = vcvt.s32.f32 %v900
    %v908 = vmul.f32 %v907, %v905
    %v909 = vxor.u32 %v908, 2147483648
    %v910 = vsel %vm827, %v909, %v908
    %v911 = vsub.s32 4, %v887
    %v912 = vsel %vm827, %v911, %v887
    %v913 = vsel %vm826, %v43, %v910
    %v914 = vsel %vm826, 0, %v912
    %v915 = vcosq.f32.pop %v913
    %v916 = vsinq.f32.pop %v913
    %vm917 = vweird.f32 %v43
    %v918 = vand.u32 %v914, 3
    %vm919 = vcmp.lt.s32.totalorder %v918, 2
    %vm920 = vcmp.eq.s32.totalorder %v918, 0
    %v921 = vxor.u32 %v916, 2147483648
    %v922 = vsel %vm920, %v915, %v921
    %vm923 = vcmp.eq.s32.totalorder %v918, 2
    %v924 = vxor.u32 %v915, 2147483648
    %v925 = vsel %vm923, %v924, %v916
    %v926 = vsel %vm919, %v922, %v925
    %v927 = vsel %vm917, nan, %v926
    %928 = vst [vmem:[#allocation7] sm:$0xfe] %v206
    %929 = vst [vmem:[#allocation7 + $0x8] sm:$0xfe] %v309
    %930 = vst [vmem:[#allocation7 + $0x10] sm:$0xfe] %v412
    %931 = vst [vmem:[#allocation7 + $0x18] sm:$0xfe] %v515
    %932 = vst [vmem:[#allocation7 + $0x20] sm:$0xfe] %v618
    %933 = vst [vmem:[#allocation7 + $0x28] sm:$0xfe] %v721
    %934 = vst [vmem:[#allocation7 + $0x30] sm:$0xfe] %v824
    %935 = vst [vmem:[#allocation7 + $0x38] sm:$0xfe] %v927
    %v936 = vld [vmem:[#allocation5] sm:$0xff]
    %v937 = vld [vmem:[#allocation5 + $0x8] sm:$0xff]
    %v940 = vcombine.high %v936, %v936
    %v942 = vunpack.c.l.s4 1983009808
    %v943 = vunpack.c.0.s8 %v942
    %v944 = vlaneseq
    %v945 = vshrl.u32 %v944, 7
    %v946 = vsub.s32 %v943, %v945
    %v947 = vrot.slane %v936, %v946
    %v949 = vunpack.c.l.s4 1983009808
    %v950 = vunpack.c.0.s8 %v949
    %v951 = vlaneseq
    %v952 = vshrl.u32 %v951, 7
    %v953 = vsub.s32 %v950, %v952
    %v954 = vrot.slane %v940, %v953
    %v955 = vcombine.high %v947, %v947
    %v956 = vcombine.high %v954, %v954
    %v957 = vcombine.high %v937, %v937
    %v959 = vunpack.c.l.s4 1983009808
    %v960 = vunpack.c.0.s8 %v959
    %v961 = vlaneseq
    %v962 = vshrl.u32 %v961, 7
    %v963 = vsub.s32 %v960, %v962
    %v964 = vrot.slane %v937, %v963
    %v966 = vunpack.c.l.s4 1983009808
    %v967 = vunpack.c.0.s8 %v966
    %v968 = vlaneseq
    %v969 = vshrl.u32 %v968, 7
    %v970 = vsub.s32 %v967, %v969
    %v971 = vrot.slane %v957, %v970
    %v972 = vcombine.high %v964, %v964
    %v973 = vcombine.high %v971, %v971
    %982 = vst [vmem:[#allocation7 + $0x40] sm:$0x3] %v947
    %983 = vst [vmem:[#allocation7 + $0x48] sm:$0x3] %v955
    %984 = vst [vmem:[#allocation7 + $0x50] sm:$0x3] %v954
    %985 = vst [vmem:[#allocation7 + $0x58] sm:$0x3] %v956
    %986 = vst [vmem:[#allocation7 + $0x60] sm:$0x3] %v964
    %987 = vst [vmem:[#allocation7 + $0x68] sm:$0x3] %v972
    %988 = vst [vmem:[#allocation7 + $0x70] sm:$0x3] %v971
    %989 = vst [vmem:[#allocation7 + $0x78] sm:$0x3] %v973
    // Predicated region
    $region18: #{tpu_custom_call.1} parent=1 // pred_check
      _
    $region19: #{tpu_custom_call.1} parent=1 // pred_check_branch
      %991 = sbr.rel (0) target = $region21
    $region20: #{tpu_custom_call.1} parent=1 // pred_region
      %s993 = ssub.s32 2048, 2048
      %994 = vsyncadd [#allocation4], %s993
      %s995 = sshll.u32 [#allocation7], 4
      %s996 = int_to_ptr.vmem [resolvable:$true] %s995
      %1001 = dma.vmem_to_hbm [thread:$0]  %s996, 2048, %s2, [#allocation4], 1024, 1024, 64
    $region21: #{tpu_custom_call.1} parent=1 // pred_fallthru
      _
    // Predicated region
    $region22: #{tpu_custom_call.1} parent=1 // pred_check
      _
    $region23: #{tpu_custom_call.1} parent=1 // pred_check_branch
      %1003 = sbr.rel (0) target = $region25
    $region24: #{tpu_custom_call.1} parent=1 // pred_region
      %1004 = dma.done [#allocation4], 2048
    $region25: #{tpu_custom_call.1} parent=1 // pred_fallthru
      _
    %1005 = vsyncpa [#allocation3], 1
    %1006 = vsyncpa [#allocation6], 1
    %1007 = vsyncpa [#allocation4], 1

</llo_original>
